<compile_context>
chip_gen: v5e
topology: v5e:2x2
jax: 0.10.0
libtpu: 0.0.40
codegen_flags: <defaults>
</compile_context>

<pallas_src>
import jax
import jax.numpy as jnp
from jax.experimental import pallas as pl
from jax.experimental.pallas import tpu as pltpu


def _linear_kernel(x_ref, w_ref, b_ref, o_ref, acc_ref):
    # x_ref  : (tile_b, tile_f) VMEM, streamed x tile in its native dtype
    # w_ref  : (1, tile_f)      VMEM, f32 weight row (resident / per-F-tile)
    # b_ref  : (1,)             SMEM f32 bias scalar
    # o_ref  : (tile_b, 1)      output tile (revisited across the F axis)
    # acc_ref: (tile_b, 1)      f32 VMEM accumulator scratch
    j = pl.program_id(1)

    @pl.when(j == 0)
    def _():
        acc_ref[...] = jnp.zeros_like(acc_ref)

    # Cast to f32 in-register: HBM still only moves the native dtype, and the
    # VPU math is exact f32 on every TPU generation (v5e has no bf16 VALU).
    prod = x_ref[...].astype(jnp.float32) * w_ref[...]
    acc_ref[...] += jnp.sum(prod, axis=-1, keepdims=True)

    @pl.when(j == pl.num_programs(1) - 1)
    def _():
        o_ref[...] = (acc_ref[...] + b_ref[0]).astype(o_ref.dtype)


def _choose_tiles(B, F, itemsize, target_block_bytes):
    """Pick (tile_b, tile_f) so one x block is ~target_block_bytes."""
    # Keep F whole on the lane axis unless even an 8-row slab overflows the
    # target.  F is only split when it divides into equal multiple-of-128
    # chunks (lane alignment + no ragged F reads into the accumulator).
    tile_f = F
    if 8 * F * itemsize > target_block_bytes and F % 128 == 0:
        for nf in range(2, F // 128 + 1):
            cand = F // nf
            if F % nf == 0 and cand % 128 == 0 and \
                    256 * cand * itemsize <= target_block_bytes:
                tile_f = cand
                break

    rows = target_block_bytes // max(1, tile_f * itemsize)
    rows = max(8, (rows // 8) * 8)          # sublane-aligned row count
    tile_b = B if rows >= B else rows       # full-dim block is always legal
    return tile_b, tile_f


def optimize_forward(x, w, b, *, target_block_bytes=3 * 1024 * 1024):
    """Pallas equivalent of Optimize.forward(x) with model = Linear(F, 1).

    x : (B, F) float (streamed in its native dtype, e.g. f32 or bf16)
    w : (F, 1) / (1, F) / (F,) linear weight
    b : (1,) bias
    returns (B, 1) in x.dtype
    """
    x = jnp.asarray(x)
    if not jnp.issubdtype(x.dtype, jnp.floating):
        x = x.astype(jnp.float32)           # mirrors torch.FloatTensor(x)
    B, F = x.shape
    itemsize = x.dtype.itemsize

    w_row = jnp.asarray(w, jnp.float32).reshape(1, F)    # lane-dense, f32
    b_vec = jnp.asarray(b, jnp.float32).reshape(1)       # SMEM scalar

    tile_b, tile_f = _choose_tiles(B, F, itemsize, target_block_bytes)
    num_b = -(-B // tile_b)                 # ragged last block is clipped
    num_f = F // tile_f                     # exact by construction

    # Explicit VMEM budget: x double-buffered + weight + output + accumulator.
    needed = (2 * tile_b * tile_f * itemsize + 2 * tile_f * 4
              + 2 * tile_b * 4 + tile_b * 4)
    vmem_limit = int(min(64 * 1024 * 1024, max(32 * 1024 * 1024, 2 * needed)))

    out = pl.pallas_call(
        _linear_kernel,
        out_shape=jax.ShapeDtypeStruct((B, 1), x.dtype),
        grid_spec=pltpu.PrefetchScalarGridSpec(
            num_scalar_prefetch=0,
            grid=(num_b, num_f),
            in_specs=[
                pl.BlockSpec((tile_b, tile_f), lambda i, j: (i, j)),  # x stream
                pl.BlockSpec((1, tile_f), lambda i, j: (0, j)),       # weights
                pl.BlockSpec(memory_space=pltpu.SMEM),                # bias
            ],
            out_specs=pl.BlockSpec((tile_b, 1), lambda i, j: (i, 0)),
            scratch_shapes=[pltpu.VMEM((tile_b, 1), jnp.float32)],
        ),
        compiler_params=pltpu.CompilerParams(
            dimension_semantics=("parallel", "arbitrary"),  # batch across cores
            vmem_limit_bytes=vmem_limit,
        ),
        cost_estimate=pl.CostEstimate(
            flops=2 * B * F,
            transcendentals=0,
            bytes_accessed=B * F * itemsize + F * 4 + 4 + B * itemsize,
        ),
    )(x, w_row, b_vec)

    return out


if __name__ == "__main__":
    key = jax.random.PRNGKey(0)
    kx, kw, kb = jax.random.split(key, 3)

    batch, n_features = 8, 32

    x = jax.random.normal(kx, (batch, n_features), dtype=jnp.float32)
    # Deterministic "Linear(n_features, 1)" parameters.
    w = jax.random.normal(kw, (n_features, 1), dtype=jnp.float32) * 0.1
    b = jax.random.normal(kb, (1,), dtype=jnp.float32) * 0.1

    pred = optimize_forward(x, w, b)
    jax.block_until_ready(pred)

    ref = x @ w + b.reshape(1, 1)
    assert pred.shape == (batch, 1)
    assert jnp.allclose(pred, ref, atol=1e-5, rtol=1e-5)

    # Also exercise the no-pad ragged-batch path (B not a multiple of tile_b)
    # by forcing a tiny block target: the clipped tail block must still give
    # exact results for the valid rows.
    batch2 = 19
    x2 = jax.random.normal(kx, (batch2, n_features), dtype=jnp.float32)
    pred2 = optimize_forward(x2, w, b, target_block_bytes=8 * n_features * 4)
    jax.block_until_ready(pred2)
    ref2 = x2 @ w + b.reshape(1, 1)
    assert pred2.shape == (batch2, 1)
    assert jnp.allclose(pred2, ref2, atol=1e-5, rtol=1e-5)

    print("KERNEL_OK")
</pallas_src>

<mosaic_0001>
module attributes {stable_mosaic.version = 11 : i64} {
  func.func @_linear_kernel(%arg0: i32, %arg1: i32, %arg2: memref<8x32xf32, #tpu.memory_space<vmem>>, %arg3: memref<1x32xf32, #tpu.memory_space<vmem>>, %arg4: memref<1xf32, #tpu.memory_space<smem>>, %arg5: memref<8x1xf32, #tpu.memory_space<vmem>>, %arg6: memref<8x1xf32, #tpu.memory_space<vmem>>) attributes {dimension_semantics = [#tpu.dimension_semantics<parallel>, #tpu.dimension_semantics<arbitrary>], iteration_bounds = array<i64: 1, 1>, scalar_prefetch = 0 : i64, scratch_operands = 1 : i64, tpu.core_type = #tpu.core_type<tc>, window_params = [{transform_indices = @transform_0, window_bounds = array<i64: 8, 32>}, {transform_indices = @transform_1, window_bounds = array<i64: 1, 32>}, {transform_indices = @transform_2, window_bounds = array<i64: 1>}, {transform_indices = @transform_3, window_bounds = array<i64: 8, 1>}]} {
    %c0_i32 = arith.constant 0 : i32
    %0 = arith.cmpi eq, %arg1, %c0_i32 : i32
    %1 = arith.extui %0 : i1 to i32
    %c0_i32_0 = arith.constant 0 : i32
    %2 = arith.cmpi ne, %1, %c0_i32_0 : i32
    scf.if %2 {
      %cst_10 = arith.constant 0.000000e+00 : f32
      %15 = vector.broadcast %cst_10 : f32 to vector<8x1xf32>
      %c0_11 = arith.constant 0 : index
      %c0_12 = arith.constant 0 : index
      %16 = vector.load %arg6[%c0_11, %c0_12] : memref<8x1xf32, #tpu.memory_space<vmem>>, vector<8x1xf32>
      tpu.vector_store %arg6[%c0_11, %c0_12], %15 {strides = array<i32>} : memref<8x1xf32, #tpu.memory_space<vmem>>, vector<8x1xf32>,
    } else {
    }
    %c0 = arith.constant 0 : index
    %c0_1 = arith.constant 0 : index
    %3 = vector.load %arg2[%c0, %c0_1] : memref<8x32xf32, #tpu.memory_space<vmem>>, vector<8x32xf32>
    %c0_2 = arith.constant 0 : index
    %c0_3 = arith.constant 0 : index
    %4 = vector.load %arg3[%c0_2, %c0_3] : memref<1x32xf32, #tpu.memory_space<vmem>>, vector<1x32xf32>
    %5 = vector.broadcast %4 : vector<1x32xf32> to vector<8x32xf32>
    %6 = arith.mulf %3, %5 : vector<8x32xf32>
    %c0_4 = arith.constant 0 : index
    %c0_5 = arith.constant 0 : index
    %7 = vector.load %arg6[%c0_4, %c0_5] : memref<8x1xf32, #tpu.memory_space<vmem>>, vector<8x1xf32>
    %cst = arith.constant dense<0.000000e+00> : vector<8xf32>
    %8 = vector.multi_reduction <add>, %6, %cst [1] : vector<8x32xf32> to vector<8xf32>
    %9 = vector.shape_cast %8 : vector<8xf32> to vector<8x1xf32>
    %10 = arith.addf %7, %9 : vector<8x1xf32>
    %c0_6 = arith.constant 0 : index
    %c0_7 = arith.constant 0 : index
    %11 = vector.load %arg6[%c0_6, %c0_7] : memref<8x1xf32, #tpu.memory_space<vmem>>, vector<8x1xf32>
    tpu.vector_store %arg6[%c0_6, %c0_7], %10 {strides = array<i32>} : memref<8x1xf32, #tpu.memory_space<vmem>>, vector<8x1xf32>,
    %c0_i32_8 = arith.constant 0 : i32
    %12 = arith.cmpi eq, %arg1, %c0_i32_8 : i32
    %13 = arith.extui %12 : i1 to i32
    %c0_i32_9 = arith.constant 0 : i32
    %14 = arith.cmpi ne, %13, %c0_i32_9 : i32
    scf.if %14 {
      %c0_10 = arith.constant 0 : index
      %c0_11 = arith.constant 0 : index
      %15 = vector.load %arg6[%c0_10, %c0_11] : memref<8x1xf32, #tpu.memory_space<vmem>>, vector<8x1xf32>
      %c0_12 = arith.constant 0 : index
      %16 = memref.load %arg4[%c0_12] : memref<1xf32, #tpu.memory_space<smem>>
      %17 = vector.broadcast %16 : f32 to vector<8x1xf32>
      %18 = arith.addf %15, %17 : vector<8x1xf32>
      %c0_13 = arith.constant 0 : index
      %c0_14 = arith.constant 0 : index
      %19 = vector.load %arg5[%c0_13, %c0_14] : memref<8x1xf32, #tpu.memory_space<vmem>>, vector<8x1xf32>
      tpu.vector_store %arg5[%c0_13, %c0_14], %18 {strides = array<i32>} : memref<8x1xf32, #tpu.memory_space<vmem>>, vector<8x1xf32>,
    } else {
    }
    return
  }
  func.func @transform_0(%arg0: i32, %arg1: i32) -> (i32, i32) {
    %c0_i32 = arith.constant 0 : i32
    return %arg0, %arg1 : i32, i32
  }
  func.func @transform_1(%arg0: i32, %arg1: i32) -> (i32, i32) {
    %c0_i32 = arith.constant 0 : i32
    %c0_i32_0 = arith.constant 0 : i32
    return %c0_i32, %arg1 : i32, i32
  }
  func.func @transform_2(%arg0: i32, %arg1: i32) -> i32 {
    %c0_i32 = arith.constant 0 : i32
    %c0_i32_0 = arith.constant 0 : i32
    return %c0_i32 : i32
  }
  func.func @transform_3(%arg0: i32, %arg1: i32) -> (i32, i32) {
    %c0_i32 = arith.constant 0 : i32
    %c0_i32_0 = arith.constant 0 : i32
    return %arg0, %c0_i32 : i32, i32
  }
}

</mosaic_0001>

<llo_original>
// kernel: tpu_custom_call.1
$region0: #{tpu_custom_call.1}
  #allocation0 [shape = 'u32[]', space=smem, size = 0x4, offset = 0x4, fixed_abs, tag = 'smem constant byte address 0x4 - core index']
  #allocation1 [shape = 'u32[72,128]{1,0:T(1,128)}', space=vmem, size = 0x9000, scoped, tag = 'internal scratch']
  #allocation2 [shape = 'f32[8,1]{1,0:T(8,128)}', space=vmem, size = 0x1000, scoped, tag = 'scratch operand']
  #allocation3 [shape = 'f32[1]{0:T(128)S(6)}', space=smem, size = 0x200, scoped, tag = 'scoped memory for tpu_custom_call.1']
  %s0 = inlined_call_operand.hbm [shape: f32[8,32], index: 0, kind: input, shape index: {}]
  %s1 = inlined_call_operand.vmem [shape: f32[1,32], index: 1, kind: input, shape index: {}]
  %s2 = inlined_call_operand.<no memory space> [shape: f32[1], index: 2, kind: input, shape index: {}]
  %s3 = inlined_call_operand.vmem [shape: f32[8,1], index: 3, kind: output, shape index: {}]
  %s4 = sld [smem:[#allocation0]]
  $region34: #{tpu_custom_call.1} parent=0
    _
  %s6 = ssub.s32 1, %s4
  %s7 = scalar_select 0, %s6, %s4
  %8 = sst [smem:[#allocation3]] %s2
  $region1: #{tpu_custom_call.1} parent=0
    #allocation4 [shape = 'u8[4096]{0}', space=vmem, size = 0x1000, scoped, tag = 'input window, operand 0, single buffered']
    #allocation5 [shape = 's32[1]{0}', space=sflag, size = 0x4, scoped, tag = 'scoped memory for tpu_custom_call.1']
    %9 = vsyncpa [#allocation5], 0
    // Predicated region
    $region2: #{tpu_custom_call.1} parent=1 // pred_check
      _
    $region3: #{tpu_custom_call.1} parent=1 // pred_check_branch
      %11 = sbr.rel (0) target = $region5
    $region4: #{tpu_custom_call.1} parent=1 // pred_region
      %13 = vsyncadd [#allocation5], 0
      %s15 = sshll.u32 %s0, 4
      %s16 = int_to_ptr.hbm [resolvable:$true] %s15
      %s17 = sshll.u32 [#allocation4], 4
      %s18 = int_to_ptr.vmem [resolvable:$true] %s17
      %20 = dma.hbm_to_vmem [thread:$0]  %s16, 128, %s18, [#allocation5]
    $region5: #{tpu_custom_call.1} parent=1 // pred_fallthru
      _
    // Predicated region
    $region6: #{tpu_custom_call.1} parent=1 // pred_check
      _
    $region7: #{tpu_custom_call.1} parent=1 // pred_check_branch
      %22 = sbr.rel (0) target = $region9
    $region8: #{tpu_custom_call.1} parent=1 // pred_region
      _
    $region9: #{tpu_custom_call.1} parent=1 // pred_fallthru
      _
    // Predicated region
    $region10: #{tpu_custom_call.1} parent=1 // pred_check
      _
    $region11: #{tpu_custom_call.1} parent=1 // pred_check_branch
      %24 = sbr.rel (0) target = $region13
    $region12: #{tpu_custom_call.1} parent=1 // pred_region
      _
    $region13: #{tpu_custom_call.1} parent=1 // pred_fallthru
      _
    // Predicated region
    $region14: #{tpu_custom_call.1} parent=1 // pred_check
      _
    $region15: #{tpu_custom_call.1} parent=1 // pred_check_branch
      %26 = sbr.rel (0) target = $region17
    $region16: #{tpu_custom_call.1} parent=1 // pred_region
      %28 = dma.done [#allocation5], 128
    $region17: #{tpu_custom_call.1} parent=1 // pred_fallthru
      _
    %p29 = scmp.eq.s32.totalorder 0, 0
    // Predicated region
    $region18: #{tpu_custom_call.1} parent=1 // pred_check
      %p30 = pneg %p29
    $region19: #{tpu_custom_call.1} parent=1 // pred_check_branch
      %32 = sbr.rel (%p30) target = $region21
    $region20: #{tpu_custom_call.1} parent=1 // pred_region
      %vm33 = vcmask 7168
      %34 = vst.msk [vmem:[#allocation2] sm:$0xff] %vm33, 0.0
    $region21: #{tpu_custom_call.1} parent=1 // pred_fallthru
      _
    %v35 = vld [vmem:[#allocation4] sm:$0xff]
    %v36 = vld [vmem:[%s1] sm:$0x1]
    %v38 = vperm.slane %v36, 0
    %v40 = vmul.f32 %v35, %v38
    %v41 = vld [vmem:[#allocation2] sm:$0xff]
    %vm42 = vcmask 261120
    %v43 = vsel %vm42, %v40, 0.0
    %44 = vadd.xlane.f32.xlu0 %v43
    %v45 = vpop.xlane.xlu0 %44
    %v46 = vadd.f32 %v41, %v45
    %vm47 = vcmask 7168
    %48 = vst.msk [vmem:[#allocation2] sm:$0xff] %vm47, %v46
    // Predicated region
    $region22: #{tpu_custom_call.1} parent=1 // pred_check
      %p49 = pneg %p29
    $region23: #{tpu_custom_call.1} parent=1 // pred_check_branch
      %51 = sbr.rel (%p49) target = $region25
    $region24: #{tpu_custom_call.1} parent=1 // pred_region
      %v52 = vld [vmem:[#allocation2] sm:$0xff]
      %s53 = sld [smem:[#allocation3]]
      %v54 = vstv %s53
      %v55 = vadd.f32 %v52, %v54
      %56 = vst.msk [vmem:[%s3] sm:$0xff] %vm47, %v55
    $region25: #{tpu_custom_call.1} parent=1 // pred_fallthru
      _
    // Predicated region
    $region26: #{tpu_custom_call.1} parent=1 // pred_check
      _
    $region27: #{tpu_custom_call.1} parent=1 // pred_check_branch
      %58 = sbr.rel (0) target = $region29
    $region28: #{tpu_custom_call.1} parent=1 // pred_region
      _
    $region29: #{tpu_custom_call.1} parent=1 // pred_fallthru
      _
    // Predicated region
    $region30: #{tpu_custom_call.1} parent=1 // pred_check
      _
    $region31: #{tpu_custom_call.1} parent=1 // pred_check_branch
      %60 = sbr.rel (0) target = $region33
    $region32: #{tpu_custom_call.1} parent=1 // pred_region
      _
    $region33: #{tpu_custom_call.1} parent=1 // pred_fallthru
      _
    %61 = vsyncpa [#allocation5], 1

</llo_original>
